<compile_context>
chip_gen: v7x
topology: tpu7x:2x2x1
jax: 0.10.0
libtpu: 0.0.40
codegen_flags: <defaults>
</compile_context>

<pallas_src>
import functools

import jax
import jax.numpy as jnp
from jax.experimental import pallas as pl
from jax.experimental.pallas import tpu as pltpu


def _round_up(n, m):
    return ((n + m - 1) // m) * m


def _lyapunov_kernel(alpha, x_ref, w1_ref, b1_ref, w2_ref, b2_ref,
                     w3_ref, b3_ref, phi0_ref, out_ref):
    """One batch tile: 2-layer tanh MLP + row-reduce output layer + alpha*||x||."""
    x = x_ref[...].astype(jnp.float32)

    h = jnp.tanh(jnp.dot(x, w1_ref[...], preferred_element_type=jnp.float32)
                 + b1_ref[...])
    h = jnp.tanh(jnp.dot(h, w2_ref[...], preferred_element_type=jnp.float32)
                 + b2_ref[...])
    # Final (hidden -> 1) layer off the MXU: VPU mul + XLU lane reduce.
    phi_x = jnp.sum(h * w3_ref[...], axis=-1, keepdims=True) + b3_ref[...]

    norm = jnp.sqrt(jnp.sum(x * x, axis=-1, keepdims=True))
    out_ref[...] = jnp.abs(phi_x - phi0_ref[...]) + alpha * norm


def _phi_zero(params):
    """phi(0) -- batch independent, depends only on the parameters."""
    h = jnp.tanh(params["b1"])                                   # 0 @ w1 == 0
    h = jnp.tanh(h @ params["w2"] + params["b2"])
    return h @ params["w3"] + params["b3"]                       # (1, 1)


def lyapunov_net_forward(x, params, alpha=0.001, block_batch=1024):
    """x: (B, dim) float32. params: w1,b1,w2,b2,w3,b3 (biases 2D, weights (in,out)).
    Returns V(x) with shape (B, 1)."""
    B, dim = x.shape
    h1 = params["w1"].shape[1]
    h2 = params["w2"].shape[1]

    phi0 = _phi_zero(params)                        # (1, 1), computed once per call
    w3_row = params["w3"].reshape(1, h2)            # final layer as a lane row

    # Batch tiling: pad B to a multiple of the tile so every grid step is full.
    # (Padded rows are zeros -> V = 0 there; sliced off below.)
    TB = min(block_batch, 8 * pl.cdiv(B, 8))
    Bp = _round_up(B, TB)
    if Bp != B:
        x = jnp.pad(x, ((0, Bp - B), (0, 0)))
    grid = (Bp // TB,)

    def const(shape):
        # Weights / biases / phi0: same block every grid step -> VMEM resident.
        return pl.BlockSpec(shape, lambda i: (0, 0))

    kernel = functools.partial(_lyapunov_kernel, float(alpha))
    out = pl.pallas_call(
        kernel,
        out_shape=jax.ShapeDtypeStruct((Bp, 1), jnp.float32),
        grid=grid,
        in_specs=[
            pl.BlockSpec((TB, dim), lambda i: (i, 0)),   # x: batch-tiled, pipelined
            const((dim, h1)), const((1, h1)),            # w1, b1
            const((h1, h2)), const((1, h2)),             # w2, b2
            const((1, h2)), const((1, 1)),               # w3 (row), b3
            const((1, 1)),                               # phi(0)
        ],
        out_specs=pl.BlockSpec((TB, 1), lambda i: (i, 0)),
        compiler_params=pltpu.CompilerParams(
            dimension_semantics=("parallel",)),
    )(x, params["w1"], params["b1"], params["w2"], params["b2"],
      w3_row, params["b3"], phi0)
    return out[:B]


def init_params(key, dim, hidden_dims=(64, 64)):
    """Kaiming-uniform-style init (nonlinearity='tanh' => gain=5/3), zero biases,
    matching the PyTorch _initialize_weights intent."""
    dims = [dim] + list(hidden_dims) + [1]
    params = {}
    gain = 5.0 / 3.0
    for i in range(len(dims) - 1):
        fan_in, fan_out = dims[i], dims[i + 1]
        bound = gain * (3.0 / fan_in) ** 0.5
        key, sub = jax.random.split(key)
        # stored as (in, out) so the kernel computes x @ W
        params[f"w{i+1}"] = jax.random.uniform(
            sub, (fan_in, fan_out), jnp.float32, minval=-bound, maxval=bound)
        params[f"b{i+1}"] = jnp.zeros((1, fan_out), jnp.float32)
    return params


def reference_forward(x, params, alpha=0.001):
    def phi(inp):
        h = jnp.tanh(inp @ params["w1"] + params["b1"])
        h = jnp.tanh(h @ params["w2"] + params["b2"])
        return h @ params["w3"] + params["b3"]
    norm = jnp.linalg.norm(x, axis=-1, keepdims=True)
    return jnp.abs(phi(x) - phi(jnp.zeros_like(x))) + alpha * norm


if __name__ == "__main__":
    key = jax.random.PRNGKey(0)
    dim = 4
    hidden_dims = (32, 32)
    alpha = 0.001

    k_param, k_x1, k_x2 = jax.random.split(key, 3)
    params = init_params(k_param, dim, hidden_dims)

    # Case 1: batch that is already tile-aligned.
    x8 = jax.random.normal(k_x1, (8, dim), jnp.float32)
    v8 = jax.block_until_ready(lyapunov_net_forward(x8, params, alpha=alpha))
    v8_ref = reference_forward(x8, params, alpha=alpha)
    assert v8.shape == (8, 1)
    assert jnp.allclose(v8, v8_ref, atol=1e-5, rtol=1e-5), (v8, v8_ref)

    # Case 2: ragged batch (exercises the pad-to-tile path).
    x13 = jax.random.normal(k_x2, (13, dim), jnp.float32)
    v13 = jax.block_until_ready(lyapunov_net_forward(x13, params, alpha=alpha))
    v13_ref = reference_forward(x13, params, alpha=alpha)
    assert v13.shape == (13, 1)
    assert jnp.allclose(v13, v13_ref, atol=1e-5, rtol=1e-5), (v13, v13_ref)

    print("KERNEL_OK")
</pallas_src>

<mosaic_0001>
module attributes {stable_mosaic.version = 11 : i64} {
  func.func @_lyapunov_kernel(%arg0: i32, %arg1: memref<8x4xf32, #tpu.memory_space<vmem>>, %arg2: memref<4x32xf32, #tpu.memory_space<vmem>>, %arg3: memref<1x32xf32, #tpu.memory_space<vmem>>, %arg4: memref<32x32xf32, #tpu.memory_space<vmem>>, %arg5: memref<1x32xf32, #tpu.memory_space<vmem>>, %arg6: memref<1x32xf32, #tpu.memory_space<vmem>>, %arg7: memref<1x1xf32, #tpu.memory_space<vmem>>, %arg8: memref<1x1xf32, #tpu.memory_space<vmem>>, %arg9: memref<8x1xf32, #tpu.memory_space<vmem>>) attributes {dimension_semantics = [#tpu.dimension_semantics<parallel>], iteration_bounds = array<i64: 1>, scalar_prefetch = 0 : i64, scratch_operands = 0 : i64, tpu.core_type = #tpu.core_type<tc>, window_params = [{transform_indices = @transform_0, window_bounds = array<i64: 8, 4>}, {pipeline_mode = #tpu.pipeline_mode<synchronous>, transform_indices = @transform_1, window_bounds = array<i64: 4, 32>}, {pipeline_mode = #tpu.pipeline_mode<synchronous>, transform_indices = @transform_2, window_bounds = array<i64: 1, 32>}, {pipeline_mode = #tpu.pipeline_mode<synchronous>, transform_indices = @transform_3, window_bounds = array<i64: 32, 32>}, {pipeline_mode = #tpu.pipeline_mode<synchronous>, transform_indices = @transform_4, window_bounds = array<i64: 1, 32>}, {pipeline_mode = #tpu.pipeline_mode<synchronous>, transform_indices = @transform_5, window_bounds = array<i64: 1, 32>}, {pipeline_mode = #tpu.pipeline_mode<synchronous>, transform_indices = @transform_6, window_bounds = array<i64: 1, 1>}, {pipeline_mode = #tpu.pipeline_mode<synchronous>, transform_indices = @transform_7, window_bounds = array<i64: 1, 1>}, {transform_indices = @transform_8, window_bounds = array<i64: 8, 1>}]} {
    %c0 = arith.constant 0 : index
    %c0_0 = arith.constant 0 : index
    %0 = vector.load %arg1[%c0, %c0_0] : memref<8x4xf32, #tpu.memory_space<vmem>>, vector<8x4xf32>
    %c0_1 = arith.constant 0 : index
    %c0_2 = arith.constant 0 : index
    %1 = vector.load %arg2[%c0_1, %c0_2] : memref<4x32xf32, #tpu.memory_space<vmem>>, vector<4x32xf32>
    %cst = arith.constant dense<0.000000e+00> : vector<8x32xf32>
    %2 = tpu.matmul %0, %1, %cst {dimension_numbers = #tpu.dot_dimension_numbers<[1], [0], [0], [1], [0, 0, 1, 1], [], []>} : vector<8x4xf32>, vector<4x32xf32>, vector<8x32xf32> -> vector<8x32xf32>
    %c0_3 = arith.constant 0 : index
    %c0_4 = arith.constant 0 : index
    %3 = vector.load %arg3[%c0_3, %c0_4] : memref<1x32xf32, #tpu.memory_space<vmem>>, vector<1x32xf32>
    %4 = vector.broadcast %3 : vector<1x32xf32> to vector<8x32xf32>
    %5 = arith.addf %2, %4 : vector<8x32xf32>
    %6 = math.tanh %5 : vector<8x32xf32>
    %c0_5 = arith.constant 0 : index
    %c0_6 = arith.constant 0 : index
    %7 = vector.load %arg4[%c0_5, %c0_6] : memref<32x32xf32, #tpu.memory_space<vmem>>, vector<32x32xf32>
    %cst_7 = arith.constant dense<0.000000e+00> : vector<8x32xf32>
    %8 = tpu.matmul %6, %7, %cst_7 {dimension_numbers = #tpu.dot_dimension_numbers<[1], [0], [0], [1], [0, 0, 1, 1], [], []>} : vector<8x32xf32>, vector<32x32xf32>, vector<8x32xf32> -> vector<8x32xf32>
    %c0_8 = arith.constant 0 : index
    %c0_9 = arith.constant 0 : index
    %9 = vector.load %arg5[%c0_8, %c0_9] : memref<1x32xf32, #tpu.memory_space<vmem>>, vector<1x32xf32>
    %10 = vector.broadcast %9 : vector<1x32xf32> to vector<8x32xf32>
    %11 = arith.addf %8, %10 : vector<8x32xf32>
    %12 = math.tanh %11 : vector<8x32xf32>
    %c0_10 = arith.constant 0 : index
    %c0_11 = arith.constant 0 : index
    %13 = vector.load %arg6[%c0_10, %c0_11] : memref<1x32xf32, #tpu.memory_space<vmem>>, vector<1x32xf32>
    %14 = vector.broadcast %13 : vector<1x32xf32> to vector<8x32xf32>
    %15 = arith.mulf %12, %14 : vector<8x32xf32>
    %cst_12 = arith.constant dense<0.000000e+00> : vector<8xf32>
    %16 = vector.multi_reduction <add>, %15, %cst_12 [1] : vector<8x32xf32> to vector<8xf32>
    %17 = vector.shape_cast %16 : vector<8xf32> to vector<8x1xf32>
    %c0_13 = arith.constant 0 : index
    %c0_14 = arith.constant 0 : index
    %18 = vector.load %arg7[%c0_13, %c0_14] : memref<1x1xf32, #tpu.memory_space<vmem>>, vector<1x1xf32>
    %19 = vector.broadcast %18 : vector<1x1xf32> to vector<8x1xf32>
    %20 = arith.addf %17, %19 : vector<8x1xf32>
    %21 = arith.mulf %0, %0 : vector<8x4xf32>
    %cst_15 = arith.constant dense<0.000000e+00> : vector<8xf32>
    %22 = vector.multi_reduction <add>, %21, %cst_15 [1] : vector<8x4xf32> to vector<8xf32>
    %23 = vector.shape_cast %22 : vector<8xf32> to vector<8x1xf32>
    %24 = math.sqrt %23 : vector<8x1xf32>
    %c0_16 = arith.constant 0 : index
    %c0_17 = arith.constant 0 : index
    %25 = vector.load %arg8[%c0_16, %c0_17] : memref<1x1xf32, #tpu.memory_space<vmem>>, vector<1x1xf32>
    %26 = vector.broadcast %25 : vector<1x1xf32> to vector<8x1xf32>
    %27 = arith.subf %20, %26 : vector<8x1xf32>
    %28 = math.absf %27 : vector<8x1xf32>
    %cst_18 = arith.constant 1.000000e-03 : f32
    %29 = vector.broadcast %cst_18 : f32 to vector<8x1xf32>
    %30 = arith.mulf %29, %24 : vector<8x1xf32>
    %31 = arith.addf %28, %30 : vector<8x1xf32>
    %c0_19 = arith.constant 0 : index
    %c0_20 = arith.constant 0 : index
    %32 = vector.load %arg9[%c0_19, %c0_20] : memref<8x1xf32, #tpu.memory_space<vmem>>, vector<8x1xf32>
    tpu.vector_store %arg9[%c0_19, %c0_20], %31 {strides = array<i32>} : memref<8x1xf32, #tpu.memory_space<vmem>>, vector<8x1xf32>,
    return
  }
  func.func @transform_0(%arg0: i32) -> (i32, i32) {
    %c0_i32 = arith.constant 0 : i32
    %c0_i32_0 = arith.constant 0 : i32
    return %arg0, %c0_i32 : i32, i32
  }
  func.func @transform_1(%arg0: i32) -> (i32, i32) {
    %c0_i32 = arith.constant 0 : i32
    %c0_i32_0 = arith.constant 0 : i32
    %c0_i32_1 = arith.constant 0 : i32
    return %c0_i32, %c0_i32_0 : i32, i32
  }
  func.func @transform_2(%arg0: i32) -> (i32, i32) {
    %c0_i32 = arith.constant 0 : i32
    %c0_i32_0 = arith.constant 0 : i32
    %c0_i32_1 = arith.constant 0 : i32
    return %c0_i32, %c0_i32_0 : i32, i32
  }
  func.func @transform_3(%arg0: i32) -> (i32, i32) {
    %c0_i32 = arith.constant 0 : i32
    %c0_i32_0 = arith.constant 0 : i32
    %c0_i32_1 = arith.constant 0 : i32
    return %c0_i32, %c0_i32_0 : i32, i32
  }
  func.func @transform_4(%arg0: i32) -> (i32, i32) {
    %c0_i32 = arith.constant 0 : i32
    %c0_i32_0 = arith.constant 0 : i32
    %c0_i32_1 = arith.constant 0 : i32
    return %c0_i32, %c0_i32_0 : i32, i32
  }
  func.func @transform_5(%arg0: i32) -> (i32, i32) {
    %c0_i32 = arith.constant 0 : i32
    %c0_i32_0 = arith.constant 0 : i32
    %c0_i32_1 = arith.constant 0 : i32
    return %c0_i32, %c0_i32_0 : i32, i32
  }
  func.func @transform_6(%arg0: i32) -> (i32, i32) {
    %c0_i32 = arith.constant 0 : i32
    %c0_i32_0 = arith.constant 0 : i32
    %c0_i32_1 = arith.constant 0 : i32
    return %c0_i32, %c0_i32_0 : i32, i32
  }
  func.func @transform_7(%arg0: i32) -> (i32, i32) {
    %c0_i32 = arith.constant 0 : i32
    %c0_i32_0 = arith.constant 0 : i32
    %c0_i32_1 = arith.constant 0 : i32
    return %c0_i32, %c0_i32_0 : i32, i32
  }
  func.func @transform_8(%arg0: i32) -> (i32, i32) {
    %c0_i32 = arith.constant 0 : i32
    %c0_i32_0 = arith.constant 0 : i32
    return %arg0, %c0_i32 : i32, i32
  }
}

</mosaic_0001>

<llo_original>
// kernel: tpu_custom_call.1
$region0: #{tpu_custom_call.1}
  #allocation0 [shape = 'u32[]', space=smem, size = 0x4, offset = 0x4, fixed_abs, tag = 'smem constant byte address 0x4 - core index']
  #allocation1 [shape = 'u32[144,128]{1,0:T(1,128)}', space=vmem, size = 0x12000, scoped, tag = 'internal scratch']
  #allocation2 [shape = 'f32[1,1]{1,0:T(1,128)S(1)}', space=vmem, size = 0x200, scoped, tag = 'scoped memory for tpu_custom_call.1']
  #allocation3 [shape = 'f32[1,1]{1,0:T(1,128)S(1)}', space=vmem, size = 0x200, scoped, tag = 'scoped memory for tpu_custom_call.1']
  %s0 = inlined_call_operand.vmem [shape: f32[8,4], index: 0, kind: input, shape index: {}]
  %s1 = inlined_call_operand.vmem [shape: f32[4,32], index: 1, kind: input, shape index: {}]
  %s2 = inlined_call_operand.vmem [shape: f32[1,32], index: 2, kind: input, shape index: {}]
  %s3 = inlined_call_operand.hbm [shape: f32[32,32], index: 3, kind: input, shape index: {}]
  %s4 = inlined_call_operand.vmem [shape: f32[1,32], index: 4, kind: input, shape index: {}]
  %s5 = inlined_call_operand.vmem [shape: f32[1,32], index: 5, kind: input, shape index: {}]
  %s6 = inlined_call_operand.<no memory space> [shape: f32[1,1], index: 6, kind: input, shape index: {}]
  %s7 = inlined_call_operand.<no memory space> [shape: f32[1,1], index: 7, kind: input, shape index: {}]
  %s8 = inlined_call_operand.vmem [shape: f32[8,1], index: 8, kind: output, shape index: {}]
  %s9 = sld [smem:[#allocation0]]
  $region46: #{tpu_custom_call.1} parent=0
    _
  %s11 = ssub.s32 1, %s9
  %s12 = scalar_select 0, %s11, %s9
  %v13 = vstv %s6
  %14 = vst [vmem:[#allocation2] sm:$0x1] %v13
  %v15 = vstv %s7
  %16 = vst [vmem:[#allocation3] sm:$0x1] %v15
  $region1: #{tpu_custom_call.1} parent=0
    #allocation4 [shape = 'u8[16384]{0}', space=vmem, size = 0x4000, scoped, tag = 'input window, operand 3, single buffered']
    #allocation5 [shape = 's32[1]{0}', space=sflag, size = 0x4, scoped, tag = 'scoped memory for tpu_custom_call.1']
    %17 = vsyncpa [#allocation5], 0
    // Predicated region
    $region2: #{tpu_custom_call.1} parent=1 // pred_check
      _
    $region3: #{tpu_custom_call.1} parent=1 // pred_check_branch
      %19 = sbr.rel (0) target = $region5
    $region4: #{tpu_custom_call.1} parent=1 // pred_region
      _
    $region5: #{tpu_custom_call.1} parent=1 // pred_fallthru
      _
    // Predicated region
    $region6: #{tpu_custom_call.1} parent=1 // pred_check
      _
    $region7: #{tpu_custom_call.1} parent=1 // pred_check_branch
      %21 = sbr.rel (0) target = $region9
    $region8: #{tpu_custom_call.1} parent=1 // pred_region
      _
    $region9: #{tpu_custom_call.1} parent=1 // pred_fallthru
      _
    // Predicated region
    $region10: #{tpu_custom_call.1} parent=1 // pred_check
      _
    $region11: #{tpu_custom_call.1} parent=1 // pred_check_branch
      %23 = sbr.rel (0) target = $region13
    $region12: #{tpu_custom_call.1} parent=1 // pred_region
      _
    $region13: #{tpu_custom_call.1} parent=1 // pred_fallthru
      _
    // Predicated region
    $region14: #{tpu_custom_call.1} parent=1 // pred_check
      _
    $region15: #{tpu_custom_call.1} parent=1 // pred_check_branch
      %25 = sbr.rel (0) target = $region17
    $region16: #{tpu_custom_call.1} parent=1 // pred_region
      %s27 = ssub.s32 512, 512
      %28 = vsyncadd [#allocation5], %s27
      %s29 = sshll.u32 [#allocation4], 4
      %s30 = int_to_ptr.vmem [resolvable:$true] %s29
      %35 = dma.hbm_to_vmem [thread:$0]  %s3, 512, %s30, [#allocation5], 128, 128, 8
    $region17: #{tpu_custom_call.1} parent=1 // pred_fallthru
      _
    // Predicated region
    $region18: #{tpu_custom_call.1} parent=1 // pred_check
      _
    $region19: #{tpu_custom_call.1} parent=1 // pred_check_branch
      %37 = sbr.rel (0) target = $region21
    $region20: #{tpu_custom_call.1} parent=1 // pred_region
      _
    $region21: #{tpu_custom_call.1} parent=1 // pred_fallthru
      _
    // Predicated region
    $region22: #{tpu_custom_call.1} parent=1 // pred_check
      _
    $region23: #{tpu_custom_call.1} parent=1 // pred_check_branch
      %39 = sbr.rel (0) target = $region25
    $region24: #{tpu_custom_call.1} parent=1 // pred_region
      _
    $region25: #{tpu_custom_call.1} parent=1 // pred_fallthru
      _
    // Predicated region
    $region26: #{tpu_custom_call.1} parent=1 // pred_check
      _
    $region27: #{tpu_custom_call.1} parent=1 // pred_check_branch
      %41 = sbr.rel (0) target = $region29
    $region28: #{tpu_custom_call.1} parent=1 // pred_region
      _
    $region29: #{tpu_custom_call.1} parent=1 // pred_fallthru
      _
    // Predicated region
    $region30: #{tpu_custom_call.1} parent=1 // pred_check
      _
    $region31: #{tpu_custom_call.1} parent=1 // pred_check_branch
      %43 = sbr.rel (0) target = $region33
    $region32: #{tpu_custom_call.1} parent=1 // pred_region
      _
    $region33: #{tpu_custom_call.1} parent=1 // pred_fallthru
      _
    // Predicated region
    $region34: #{tpu_custom_call.1} parent=1 // pred_check
      _
    $region35: #{tpu_custom_call.1} parent=1 // pred_check_branch
      %45 = sbr.rel (0) target = $region37
    $region36: #{tpu_custom_call.1} parent=1 // pred_region
      %46 = dma.done [#allocation5], 512
    $region37: #{tpu_custom_call.1} parent=1 // pred_fallthru
      _
    %v47 = vld [vmem:[%s0] sm:$0xff]
    %v48 = vld [vmem:[%s1] sm:$0xf]
    %v49 = vld [vmem:[%s2] sm:$0x1]
    %v51 = vlaneseq
    %v52 = vshrl.u32 %v51, 7
    %v53 = vsub.s32 0, %v52
    %v54 = vrot.slane %v49, %v53
    %vm56 = vcmask 31744
    %v58 = vsel %vm56, %v47, 0
    %vm60 = vcmask 1043456
    %v62 = vsel %vm60, %v48, 0
    %64 = vmatprep.subr.mxu0 0.0
    %65 = vmatpush1.msra.mxu0 %v62
    %66 = vmatprep.subr.mxu0 0.0
    %67 = vmatpush1.msra.mxu0 0.0
    %68 = vmatprep.subr.mxu0 0.0
    %69 = vmatpush1.msra.mxu0 0.0
    %70 = vmatprep.subr.mxu0 0.0
    %71 = vmatpush1.msra.mxu0 0.0
    %72 = vmatprep.subr.mxu0 0.0
    %73 = vmatpush1.msra.mxu0 0.0
    %74 = vmatprep.subr.mxu0 0.0
    %75 = vmatpush1.msra.mxu0 0.0
    %76 = vmatprep.subr.mxu0 0.0
    %77 = vmatpush1.msra.mxu0 0.0
    %78 = vmatprep.subr.mxu0 0.0
    %79 = vmatpush1.msra.mxu0 0.0
    %80 = vmatprep.subr.mxu0 0.0
    %81 = vmatpush1.msra.mxu0 0.0
    %82 = vmatprep.subr.mxu0 0.0
    %83 = vmatpush1.msra.mxu0 0.0
    %84 = vmatprep.subr.mxu0 0.0
    %85 = vmatpush1.msra.mxu0 0.0
    %86 = vmatprep.subr.mxu0 0.0
    %87 = vmatpush1.msra.mxu0 0.0
    %88 = vmatprep.subr.mxu0 0.0
    %89 = vmatpush1.msra.mxu0 0.0
    %90 = vmatprep.subr.mxu0 0.0
    %91 = vmatpush1.msra.mxu0 0.0
    %92 = vmatprep.subr.mxu0 0.0
    %93 = vmatpush1.msra.mxu0 0.0
    %94 = vmatprep.subr.mxu0 0.0
    %95 = vmatpush1.msra.mxu0 0.0
    %96 = vmatprep.subr.mxu0 0.0
    %97 = vmatpush1.msra.mxu0 0.0
    %98 = vmatprep.subr.mxu0 0.0
    %99 = vmatpush1.msra.mxu0 0.0
    %100 = vmatprep.subr.mxu0 0.0
    %101 = vmatpush1.msra.mxu0 0.0
    %102 = vmatprep.subr.mxu0 0.0
    %103 = vmatpush1.msra.mxu0 0.0
    %104 = vmatprep.subr.mxu0 0.0
    %105 = vmatpush1.msra.mxu0 0.0
    %106 = vmatprep.subr.mxu0 0.0
    %107 = vmatpush1.msra.mxu0 0.0
    %108 = vmatprep.subr.mxu0 0.0
    %109 = vmatpush1.msra.mxu0 0.0
    %110 = vmatprep.subr.mxu0 0.0
    %111 = vmatpush1.msra.mxu0 0.0
    %112 = vmatprep.subr.mxu0 0.0
    %113 = vmatpush1.msra.mxu0 0.0
    %114 = vmatprep.subr.mxu0 0.0
    %115 = vmatpush1.msra.mxu0 0.0
    %116 = vmatprep.subr.mxu0 0.0
    %117 = vmatpush1.msra.mxu0 0.0
    %118 = vmatprep.subr.mxu0 0.0
    %119 = vmatpush1.msra.mxu0 0.0
    %120 = vmatprep.subr.mxu0 0.0
    %121 = vmatpush1.msra.mxu0 0.0
    %122 = vmatprep.subr.mxu0 0.0
    %123 = vmatpush1.msra.mxu0 0.0
    %124 = vmatprep.subr.mxu0 0.0
    %125 = vmatpush1.msra.mxu0 0.0
    %126 = vmatprep.subr.mxu0 0.0
    %127 = vmatpush1.msra.mxu0 0.0
    %128 = vmatprep.mubr.f32.mxu0 0.0
    %129 = vmatmul.mubr.f32.gmra.mrb[0].mxu0 %v58
    %v130 = vpop.f32.mrb[0].mxu0
    %v131 = vadd.f32 %v54, %v130
    %v132 = vpop.f32.mrb[0].mxu0
    %133 = vdwg.mxu0
    %v134 = vtanh.pop %v131
    %v135 = vld [vmem:[#allocation4] sm:$0xff]
    %v136 = vld [vmem:[#allocation4 + $0x8] sm:$0xff]
    %v137 = vld [vmem:[#allocation4 + $0x10] sm:$0xff]
    %v138 = vld [vmem:[#allocation4 + $0x18] sm:$0xff]
    %v139 = vld [vmem:[%s4] sm:$0x1]
    %v141 = vlaneseq
    %v142 = vshrl.u32 %v141, 7
    %v143 = vsub.s32 0, %v142
    %v144 = vrot.slane %v139, %v143
    %vm146 = vcmask 261120
    %v148 = vsel %vm146, %v134, 0
    %150 = vmatprep.subr.mxu0 0.0
    %151 = vmatpush1.msra.mxu0 %v135
    %152 = vmatprep.subr.mxu0 0.0
    %153 = vmatpush1.msra.mxu0 %v136
    %154 = vmatprep.subr.mxu0 0.0
    %155 = vmatpush1.msra.mxu0 %v137
    %156 = vmatprep.subr.mxu0 0.0
    %157 = vmatpush1.msra.mxu0 %v138
    %158 = vmatprep.subr.mxu0 0.0
    %159 = vmatpush1.msra.mxu0 0.0
    %160 = vmatprep.subr.mxu0 0.0
    %161 = vmatpush1.msra.mxu0 0.0
    %162 = vmatprep.subr.mxu0 0.0
    %163 = vmatpush1.msra.mxu0 0.0
    %164 = vmatprep.subr.mxu0 0.0
    %165 = vmatpush1.msra.mxu0 0.0
    %166 = vmatprep.subr.mxu0 0.0
    %167 = vmatpush1.msra.mxu0 0.0
    %168 = vmatprep.subr.mxu0 0.0
    %169 = vmatpush1.msra.mxu0 0.0
    %170 = vmatprep.subr.mxu0 0.0
    %171 = vmatpush1.msra.mxu0 0.0
    %172 = vmatprep.subr.mxu0 0.0
    %173 = vmatpush1.msra.mxu0 0.0
    %174 = vmatprep.subr.mxu0 0.0
    %175 = vmatpush1.msra.mxu0 0.0
    %176 = vmatprep.subr.mxu0 0.0
    %177 = vmatpush1.msra.mxu0 0.0
    %178 = vmatprep.subr.mxu0 0.0
    %179 = vmatpush1.msra.mxu0 0.0
    %180 = vmatprep.subr.mxu0 0.0
    %181 = vmatpush1.msra.mxu0 0.0
    %182 = vmatprep.subr.mxu0 0.0
    %183 = vmatpush1.msra.mxu0 0.0
    %184 = vmatprep.subr.mxu0 0.0
    %185 = vmatpush1.msra.mxu0 0.0
    %186 = vmatprep.subr.mxu0 0.0
    %187 = vmatpush1.msra.mxu0 0.0
    %188 = vmatprep.subr.mxu0 0.0
    %189 = vmatpush1.msra.mxu0 0.0
    %190 = vmatprep.subr.mxu0 0.0
    %191 = vmatpush1.msra.mxu0 0.0
    %192 = vmatprep.subr.mxu0 0.0
    %193 = vmatpush1.msra.mxu0 0.0
    %194 = vmatprep.subr.mxu0 0.0
    %195 = vmatpush1.msra.mxu0 0.0
    %196 = vmatprep.subr.mxu0 0.0
    %197 = vmatpush1.msra.mxu0 0.0
    %198 = vmatprep.subr.mxu0 0.0
    %199 = vmatpush1.msra.mxu0 0.0
    %200 = vmatprep.subr.mxu0 0.0
    %201 = vmatpush1.msra.mxu0 0.0
    %202 = vmatprep.subr.mxu0 0.0
    %203 = vmatpush1.msra.mxu0 0.0
    %204 = vmatprep.subr.mxu0 0.0
    %205 = vmatpush1.msra.mxu0 0.0
    %206 = vmatprep.subr.mxu0 0.0
    %207 = vmatpush1.msra.mxu0 0.0
    %208 = vmatprep.subr.mxu0 0.0
    %209 = vmatpush1.msra.mxu0 0.0
    %210 = vmatprep.subr.mxu0 0.0
    %211 = vmatpush1.msra.mxu0 0.0
    %212 = vmatprep.subr.mxu0 0.0
    %213 = vmatpush1.msra.mxu0 0.0
    %214 = vmatprep.mubr.f32.mxu0 0.0
    %215 = vmatmul.mubr.f32.gmra.mrb[0].mxu0 %v148
    %v216 = vpop.f32.mrb[0].mxu0
    %v217 = vadd.f32 %v144, %v216
    %v218 = vpop.f32.mrb[0].mxu0
    %219 = vdwg.mxu0
    %v220 = vtanh.pop %v217
    %v221 = vld [vmem:[%s5] sm:$0x1]
    %v223 = vlaneseq
    %v224 = vshrl.u32 %v223, 7
    %v225 = vsub.s32 0, %v224
    %v226 = vrot.slane %v221, %v225
    %v228 = vmul.f32 %v220, %v226
    %v229 = vsel %vm146, %v228, 0.0
    %230 = vadd.xlane.f32.xlu0 %v229
    %v231 = vpop.xlane.xlu0 %230
    %v232 = vld [vmem:[#allocation2] sm:$0x1]
    %v234 = vlaneseq
    %v235 = vshrl.u32 %v234, 7
    %v236 = vsub.s32 0, %v235
    %v237 = vrot.slane %v232, %v236
    %v239 = vadd.f32 %v231, %v237
    %v240 = vmul.f32 %v47, %v47
    %v241 = vsel %vm56, %v240, 0.0
    %242 = vadd.xlane.f32.xlu0 %v241
    %v243 = vpop.xlane.xlu0 %242
    %v244 = vrsqrt.pop %v243
    %v245 = vmul.f32 %v243, %v244
    %vm246 = vcmp.eq.f32.partialorder %v243, inf
    %v247 = vsel %vm246, %v243, %v245
    %vm248 = vcmp.eq.f32.partialorder %v243, 0.0
    %v249 = vand.u32 %v243, 2147483648
    %v250 = vsel %vm248, %v249, %v247
    %v251 = vld [vmem:[#allocation3] sm:$0x1]
    %v253 = vlaneseq
    %v254 = vshrl.u32 %v253, 7
    %v255 = vsub.s32 0, %v254
    %v256 = vrot.slane %v251, %v255
    %v258 = vsub.f32 %v239, %v256
    %v259 = vand.u32 2147483647, %v258
    %v260 = vmul.f32 %v250, 0.001
    %v261 = vadd.f32 %v259, %v260
    %vm262 = vcmask 7168
    %263 = vst.msk [vmem:[%s8] sm:$0xff] %vm262, %v261
    // Predicated region
    $region38: #{tpu_custom_call.1} parent=1 // pred_check
      _
    $region39: #{tpu_custom_call.1} parent=1 // pred_check_branch
      %265 = sbr.rel (0) target = $region41
    $region40: #{tpu_custom_call.1} parent=1 // pred_region
      _
    $region41: #{tpu_custom_call.1} parent=1 // pred_fallthru
      _
    // Predicated region
    $region42: #{tpu_custom_call.1} parent=1 // pred_check
      _
    $region43: #{tpu_custom_call.1} parent=1 // pred_check_branch
      %267 = sbr.rel (0) target = $region45
    $region44: #{tpu_custom_call.1} parent=1 // pred_region
      _
    $region45: #{tpu_custom_call.1} parent=1 // pred_fallthru
      _
    %268 = vsyncpa [#allocation5], 1

</llo_original>
